<compile_context>
chip_gen: v7x
topology: tpu7x:2x2x1
jax: 0.10.0
libtpu: 0.0.40
codegen_flags: <defaults>
</compile_context>

<pallas_src>
import functools

import jax
import jax.numpy as jnp
from jax import lax
from jax.experimental import pallas as pl
from jax.experimental.pallas import tpu as pltpu

_LANE = 128
_SUBLANE_GRANULE = 16          # safe second-minor granule for f32/bf16 tiles
_MIB = 1024 * 1024


def _cdiv(a, b):
    return -(-a // b)


def _round_up(x, m):
    return ((x + m - 1) // m) * m


def _vmem_capacity_bytes():
    """Physical VMEM per TensorCore; conservative fallback if the query fails."""
    try:
        return int(pltpu.get_tpu_info().vmem_capacity_bytes)
    except Exception:  # unknown chip / query unsupported -> assume small VMEM
        return 64 * _MIB


def _budgets():
    """Returns (f32-expanded per-tile budget, vmem_limit_bytes, min grid blocks)."""
    vmem = _vmem_capacity_bytes()
    if vmem >= 100 * _MIB:
        # v5e / v6e class: 128 MiB VMEM, a single TensorCore runs the grid.
        return 10 * _MIB, min(vmem - 16 * _MIB, 112 * _MIB), 1
    # v7x class: 64 MiB VMEM per core, 2 cores share the "parallel" grid ->
    # smaller tiles and keep at least ~4 blocks so neither core idles.
    return 4 * _MIB, max(32 * _MIB, vmem - 16 * _MIB), 4


def _pick_tile(n_samples, num_classes, granule, f32_budget, min_blocks,
               max_tile=None):
    """Pick the sample-tile size from an f32-expanded VMEM budget."""
    budget = (f32_budget // (4 * num_classes)) // granule * granule
    budget = max(granule, budget)
    if max_tile is not None:                       # debug/test override
        budget = max(granule, min(budget, (max_tile // granule) * granule))
    if min_blocks > 1:                             # keep both v7x cores busy
        cap = _round_up(_cdiv(n_samples, min_blocks), granule)
        budget = max(granule, min(budget, cap))
    if budget >= n_samples:
        return n_samples, 1                        # one full block (== array dim)
    return budget, _cdiv(n_samples, budget)


def _pow_static(base, g):
    """x ** g for a static Python float g, avoiding exp/log when possible."""
    g = float(g)
    if g == 0.0:
        return jnp.ones_like(base)
    if g == 0.5:
        return jnp.sqrt(base)
    if g == 1.0:
        return base
    if g == 1.5:
        return base * jnp.sqrt(base)
    if g == 2.0:
        return base * base
    if g.is_integer() and 2.0 < g <= 8.0:
        out = base
        for _ in range(int(g) - 1):
            out = out * base
        return out
    return jnp.power(base, jnp.float32(g))


def _anchor_kernel(tgt_ref, x_ref, out_ref, *, class_axis, gamma_pos,
                   gamma_neg, slack, n_valid, tile):
    """One block: per-sample AnchorLoss, tail-masked, reduced to a block sum.

    x_ref:   (C, T) if class_axis == 0 else (T, C), native dtype.
    tgt_ref: (1, T) / (T, 1) int32 class labels.
    out_ref: (1, 128) f32; lane 0 holds the block's loss sum, other lanes 0.
    """
    sample_axis = 1 - class_axis
    tgt = tgt_ref[...]

    # ---- pass 1: per-sample class reductions (target gather, optional max) ----
    x = x_ref[...].astype(jnp.float32)
    cls = lax.broadcasted_iota(jnp.int32, x.shape, class_axis)
    is_tgt = cls == tgt
    pt_pos_raw = jnp.sum(jnp.where(is_tgt, x, 0.0), axis=class_axis,
                         keepdims=True)
    if gamma_pos != 0.0:
        # Only needed when the positive-class loss is modulated (anchor='pos').
        # Skipping it on the default anchor='neg' path saves a full-tile select
        # plus a cross-lane/sublane max reduction per block.
        pt_neg_raw = jnp.max(jnp.where(is_tgt, 0.0, x), axis=class_axis,
                             keepdims=True)
        pt_neg = jnp.minimum(pt_neg_raw + slack, 1.0)       # clamp(max=1)

    # ---- pass 2: losses.  Re-load from the native-dtype VMEM buffer so the
    # f32 copy of the tile does not have to stay live across both passes. ----
    x = x_ref[...].astype(jnp.float32)
    log1mx = jnp.log(1.0 - x)
    if gamma_neg == 0.0:
        loss_neg = -log1mx                                   # (1+x-pt_pos)^0 == 1
    else:
        pt_pos = jnp.maximum(pt_pos_raw - slack, 0.0)        # clamp(min=0)
        loss_neg = -_pow_static(1.0 + x - pt_pos, gamma_neg) * log1mx
    sum_neg = jnp.sum(jnp.where(is_tgt, 0.0, loss_neg), axis=class_axis,
                      keepdims=True)

    # Target-class loss: computed only on the gathered 1-wide column.
    log_pt = jnp.log(pt_pos_raw)
    if gamma_pos == 0.0:
        loss_pos = -log_pt
    else:
        loss_pos = -_pow_static(1.0 - pt_pos_raw + pt_neg, gamma_pos) * log_pt

    per_sample = sum_neg + loss_pos                          # (1, T) or (T, 1)

    # ---- in-kernel tail mask (no wrapper-side padding) + block partial sum ----
    sidx = lax.broadcasted_iota(jnp.int32, per_sample.shape, sample_axis)
    valid = (pl.program_id(0) * tile + sidx) < n_valid
    masked = jnp.where(valid, per_sample, 0.0)               # select: no NaN leak
    block_sum = jnp.sum(masked, axis=sample_axis, keepdims=True)   # (1, 1)

    lane = lax.broadcasted_iota(jnp.int32, (1, _LANE), 1)
    out_ref[...] = jnp.where(lane == 0, block_sum, 0.0)      # lane-dense row


def _launch(x, tgt, *, class_axis, tile, grid, n, c, gamma_pos, gamma_neg,
            slack, vmem_limit):
    if class_axis == 0:                # lane-major: x (C, N), tgt (1, N)
        x_spec = pl.BlockSpec((c, tile), lambda i: (0, i))
        t_spec = pl.BlockSpec((1, tile), lambda i: (0, i))
    else:                              # row-major:  x (N, C), tgt (N, 1)
        x_spec = pl.BlockSpec((tile, c), lambda i: (i, 0))
        t_spec = pl.BlockSpec((tile, 1), lambda i: (i, 0))

    itemsize = jnp.dtype(x.dtype).itemsize
    cost = pl.CostEstimate(
        flops=8 * n * c,
        transcendentals=2 * n * c,                           # log + pow per elem
        bytes_accessed=n * c * itemsize + n * 4 + grid * _LANE * 4)

    kernel = functools.partial(
        _anchor_kernel, class_axis=class_axis, gamma_pos=gamma_pos,
        gamma_neg=gamma_neg, slack=slack, n_valid=n, tile=tile)

    partial_sums = pl.pallas_call(
        kernel,
        out_shape=jax.ShapeDtypeStruct((1, grid * _LANE), jnp.float32),
        grid_spec=pltpu.PrefetchScalarGridSpec(
            num_scalar_prefetch=0,
            grid=(grid,),
            in_specs=[t_spec, x_spec],
            out_specs=pl.BlockSpec((1, _LANE), lambda i: (0, i)),
        ),
        compiler_params=pltpu.CompilerParams(
            dimension_semantics=("parallel",),
            vmem_limit_bytes=vmem_limit),
        cost_estimate=cost,
    )(tgt, x)
    # Only lane 0 of each per-block row is non-zero.
    return jnp.sum(partial_sums) / n


def anchor_loss(probs, target, *, gamma=0.5, slack=0.05, anchor="neg",
                max_tile_samples=None):
    """AnchorLoss forward.  probs: (N, C) in (0, 1); target: (N,) int labels.

    max_tile_samples is a debug/test override to force small multi-block grids.
    """
    assert anchor in ("neg", "pos"), "Anchor type should be either 'neg' or 'pos'"
    if anchor == "pos":
        gamma_pos, gamma_neg = float(gamma), 0.0
    else:
        gamma_pos, gamma_neg = 0.0, float(gamma)

    N, C = probs.shape
    f32_budget, vmem_limit, min_blocks = _budgets()

    if C <= _LANE:
        # Lane-major: batch samples on the 128-wide lane axis.
        tile, grid = _pick_tile(N, C, _LANE, f32_budget, min_blocks,
                                max_tile_samples)
        x = jnp.transpose(probs)                             # (C, N), native dtype
        tgt = jnp.reshape(target, (1, N)).astype(jnp.int32)
        class_axis = 0
    else:
        # Row-major: natural (N, C) tiles, rows sized by the VMEM budget.
        tile, grid = _pick_tile(N, C, _SUBLANE_GRANULE, f32_budget, min_blocks,
                                max_tile_samples)
        x = probs                                            # (N, C), native dtype
        tgt = jnp.reshape(target, (N, 1)).astype(jnp.int32)
        class_axis = 1

    return _launch(x, tgt, class_axis=class_axis, tile=tile, grid=grid,
                   n=N, c=C, gamma_pos=gamma_pos, gamma_neg=gamma_neg,
                   slack=float(slack), vmem_limit=vmem_limit)


def anchor_loss_ref(probs, target, *, gamma=0.5, slack=0.05, anchor="neg"):
    """Pure-JAX reference mirroring the PyTorch forward exactly."""
    if anchor == "pos":
        gp, gn = float(gamma), 0.0
    else:
        gp, gn = 0.0, float(gamma)
    x = probs.astype(jnp.float32)
    _, C = x.shape
    mask = jax.nn.one_hot(target, C, dtype=jnp.float32)
    logpt_pos = jnp.log(x)
    logpt_neg = jnp.log(1.0 - x)
    pt_pos = jnp.sum(x * mask, axis=1, keepdims=True)
    pt_neg = jnp.max(x * (1.0 - mask), axis=1, keepdims=True)
    pt_neg = jnp.minimum(pt_neg + slack, 1.0)
    pt_pos = jnp.maximum(pt_pos - slack, 0.0)
    scaling_pos = -jnp.power(1.0 - x + pt_neg, gp)
    scaling_neg = -jnp.power(1.0 + x - pt_pos, gn)
    loss = mask * (scaling_pos * logpt_pos) + (1.0 - mask) * (scaling_neg * logpt_neg)
    return jnp.mean(jnp.sum(loss, axis=1))


if __name__ == "__main__":
    key = jax.random.PRNGKey(0)
    k1, k2, k3, k4, k5, k6 = jax.random.split(key, 6)

    # Case 1: small class count (C << 128) -> lane-major kernel, both anchors.
    N1, C1 = 16, 8
    probs1 = jax.nn.sigmoid(jax.random.normal(k1, (N1, C1), dtype=jnp.float32))
    target1 = jax.random.randint(k2, (N1,), 0, C1, dtype=jnp.int32)
    for anc in ("neg", "pos"):
        out = jax.block_until_ready(
            anchor_loss(probs1, target1, gamma=0.5, slack=0.05, anchor=anc))
        ref = anchor_loss_ref(probs1, target1, gamma=0.5, slack=0.05, anchor=anc)
        assert jnp.allclose(out, ref, rtol=1e-4, atol=1e-5), (anc, out, ref)

    # Case 2: wide class count (C > 128), bf16 inputs, N not a granule multiple
    # -> row-major kernel with in-kernel f32 cast.
    N2, C2 = 36, 160
    probs2 = jax.nn.sigmoid(jax.random.normal(k3, (N2, C2), dtype=jnp.bfloat16))
    target2 = jax.random.randint(k4, (N2,), 0, C2, dtype=jnp.int32)
    out2 = jax.block_until_ready(
        anchor_loss(probs2, target2, gamma=0.5, slack=0.05, anchor="neg"))
    ref2 = anchor_loss_ref(probs2, target2, gamma=0.5, slack=0.05, anchor="neg")
    assert jnp.allclose(out2, ref2, rtol=1e-4, atol=1e-4), (out2, ref2)

    # Case 3: multi-block lane-major grid with a masked tail (N % tile != 0),
    # exercised via the debug tile cap so the test stays small.
    N3, C3 = 300, 8
    probs3 = jax.nn.sigmoid(jax.random.normal(k5, (N3, C3), dtype=jnp.float32))
    target3 = jax.random.randint(k6, (N3,), 0, C3, dtype=jnp.int32)
    out3 = jax.block_until_ready(
        anchor_loss(probs3, target3, anchor="neg", max_tile_samples=128))
    ref3 = anchor_loss_ref(probs3, target3, anchor="neg")
    assert jnp.allclose(out3, ref3, rtol=1e-4, atol=1e-5), (out3, ref3)

    # Case 4: multi-block row-major grid with a masked tail.
    N4, C4 = 40, 160
    probs4 = jax.nn.sigmoid(jax.random.normal(k5, (N4, C4), dtype=jnp.float32))
    target4 = jax.random.randint(k6, (N4,), 0, C4, dtype=jnp.int32)
    out4 = jax.block_until_ready(
        anchor_loss(probs4, target4, anchor="neg", max_tile_samples=16))
    ref4 = anchor_loss_ref(probs4, target4, anchor="neg")
    assert jnp.allclose(out4, ref4, rtol=1e-4, atol=1e-5), (out4, ref4)

    print("KERNEL_OK")
</pallas_src>

<mosaic_0001>
module attributes {stable_mosaic.version = 11 : i64} {
  func.func @_anchor_kernel(%arg0: i32, %arg1: memref<1x16xi32, #tpu.memory_space<vmem>>, %arg2: memref<8x16xf32, #tpu.memory_space<vmem>>, %arg3: memref<1x128xf32, #tpu.memory_space<vmem>>) attributes {dimension_semantics = [#tpu.dimension_semantics<parallel>], iteration_bounds = array<i64: 1>, scalar_prefetch = 0 : i64, scratch_operands = 0 : i64, tpu.core_type = #tpu.core_type<tc>, window_params = [{transform_indices = @transform_0, window_bounds = array<i64: 1, 16>}, {transform_indices = @transform_1, window_bounds = array<i64: 8, 16>}, {transform_indices = @transform_2, window_bounds = array<i64: 1, 128>}]} {
    %c0 = arith.constant 0 : index
    %c0_0 = arith.constant 0 : index
    %0 = vector.load %arg1[%c0, %c0_0] : memref<1x16xi32, #tpu.memory_space<vmem>>, vector<1x16xi32>
    %c0_1 = arith.constant 0 : index
    %c0_2 = arith.constant 0 : index
    %1 = vector.load %arg2[%c0_1, %c0_2] : memref<8x16xf32, #tpu.memory_space<vmem>>, vector<8x16xf32>
    %2 = tpu.iota {dimensions = array<i32: 0>} : vector<8x16xi32>
    %3 = vector.broadcast %0 : vector<1x16xi32> to vector<8x16xi32>
    %4 = arith.cmpi eq, %2, %3 : vector<8x16xi32>
    %cst = arith.constant 0.000000e+00 : f32
    %5 = vector.broadcast %cst : f32 to vector<8x16xf32>
    %6 = arith.select %4, %1, %5 : vector<8x16xi1>, vector<8x16xf32>
    %cst_3 = arith.constant dense<0.000000e+00> : vector<16xf32>
    %7 = vector.multi_reduction <add>, %6, %cst_3 [0] : vector<8x16xf32> to vector<16xf32>
    %8 = vector.shape_cast %7 : vector<16xf32> to vector<1x16xf32>
    %c0_4 = arith.constant 0 : index
    %c0_5 = arith.constant 0 : index
    %9 = vector.load %arg2[%c0_4, %c0_5] : memref<8x16xf32, #tpu.memory_space<vmem>>, vector<8x16xf32>
    %cst_6 = arith.constant 1.000000e+00 : f32
    %10 = vector.broadcast %cst_6 : f32 to vector<8x16xf32>
    %11 = arith.subf %10, %9 : vector<8x16xf32>
    %12 = math.log %11 : vector<8x16xf32>
    %cst_7 = arith.constant 5.000000e-02 : f32
    %13 = vector.broadcast %cst_7 : f32 to vector<1x16xf32>
    %14 = arith.subf %8, %13 : vector<1x16xf32>
    %cst_8 = arith.constant 0.000000e+00 : f32
    %15 = vector.broadcast %cst_8 : f32 to vector<1x16xf32>
    %16 = arith.maximumf %14, %15 : vector<1x16xf32>
    %cst_9 = arith.constant 1.000000e+00 : f32
    %17 = vector.broadcast %cst_9 : f32 to vector<8x16xf32>
    %18 = arith.addf %17, %9 : vector<8x16xf32>
    %19 = vector.broadcast %16 : vector<1x16xf32> to vector<8x16xf32>
    %20 = arith.subf %18, %19 : vector<8x16xf32>
    %21 = math.sqrt %20 : vector<8x16xf32>
    %cst_10 = arith.constant 0.000000e+00 : f32
    %22 = vector.broadcast %cst_10 : f32 to vector<8x16xf32>
    %23 = arith.subf %22, %21 : vector<8x16xf32>
    %24 = arith.mulf %23, %12 : vector<8x16xf32>
    %cst_11 = arith.constant 0.000000e+00 : f32
    %25 = vector.broadcast %cst_11 : f32 to vector<8x16xf32>
    %26 = arith.select %4, %25, %24 : vector<8x16xi1>, vector<8x16xf32>
    %cst_12 = arith.constant dense<0.000000e+00> : vector<16xf32>
    %27 = vector.multi_reduction <add>, %26, %cst_12 [0] : vector<8x16xf32> to vector<16xf32>
    %28 = vector.shape_cast %27 : vector<16xf32> to vector<1x16xf32>
    %29 = math.log %8 : vector<1x16xf32>
    %cst_13 = arith.constant 0.000000e+00 : f32
    %30 = vector.broadcast %cst_13 : f32 to vector<1x16xf32>
    %31 = arith.subf %30, %29 : vector<1x16xf32>
    %32 = arith.addf %28, %31 : vector<1x16xf32>
    %33 = tpu.iota {dimensions = array<i32: 1>} : vector<1x16xi32>
    %c16_i32 = arith.constant 16 : i32
    %34 = arith.muli %arg0, %c16_i32 : i32
    %35 = vector.broadcast %34 : i32 to vector<1x16xi32>
    %36 = arith.addi %35, %33 : vector<1x16xi32>
    %c16_i32_14 = arith.constant 16 : i32
    %37 = vector.broadcast %c16_i32_14 : i32 to vector<1x16xi32>
    %38 = arith.cmpi slt, %36, %37 : vector<1x16xi32>
    %cst_15 = arith.constant 0.000000e+00 : f32
    %39 = vector.broadcast %cst_15 : f32 to vector<1x16xf32>
    %40 = arith.select %38, %32, %39 : vector<1x16xi1>, vector<1x16xf32>
    %cst_16 = arith.constant dense<0.000000e+00> : vector<1xf32>
    %41 = vector.multi_reduction <add>, %40, %cst_16 [1] : vector<1x16xf32> to vector<1xf32>
    %42 = vector.shape_cast %41 : vector<1xf32> to vector<1x1xf32>
    %43 = tpu.iota {dimensions = array<i32: 1>} : vector<1x128xi32>
    %c0_i32 = arith.constant 0 : i32
    %44 = vector.broadcast %c0_i32 : i32 to vector<1x128xi32>
    %45 = arith.cmpi eq, %43, %44 : vector<1x128xi32>
    %cst_17 = arith.constant 0.000000e+00 : f32
    %46 = vector.shape_cast %42 : vector<1x1xf32> to vector<1x1xf32>
    %47 = vector.broadcast %46 : vector<1x1xf32> to vector<1x128xf32>
    %48 = vector.broadcast %cst_17 : f32 to vector<1x128xf32>
    %49 = arith.select %45, %47, %48 : vector<1x128xi1>, vector<1x128xf32>
    %c0_18 = arith.constant 0 : index
    %c0_19 = arith.constant 0 : index
    %50 = vector.load %arg3[%c0_18, %c0_19] : memref<1x128xf32, #tpu.memory_space<vmem>>, vector<1x128xf32>
    tpu.vector_store %arg3[%c0_18, %c0_19], %49 {strides = array<i32>} : memref<1x128xf32, #tpu.memory_space<vmem>>, vector<1x128xf32>,
    return
  }
  func.func @transform_0(%arg0: i32) -> (i32, i32) {
    %c0_i32 = arith.constant 0 : i32
    %c0_i32_0 = arith.constant 0 : i32
    return %c0_i32, %arg0 : i32, i32
  }
  func.func @transform_1(%arg0: i32) -> (i32, i32) {
    %c0_i32 = arith.constant 0 : i32
    %c0_i32_0 = arith.constant 0 : i32
    return %c0_i32, %arg0 : i32, i32
  }
  func.func @transform_2(%arg0: i32) -> (i32, i32) {
    %c0_i32 = arith.constant 0 : i32
    %c0_i32_0 = arith.constant 0 : i32
    return %c0_i32, %arg0 : i32, i32
  }
}

</mosaic_0001>

<llo_original>
// kernel: tpu_custom_call.1
$region0: #{tpu_custom_call.1}
  #allocation0 [shape = 'u32[]', space=smem, size = 0x4, offset = 0x4, fixed_abs, tag = 'smem constant byte address 0x4 - core index']
  #allocation1 [shape = 'u32[144,128]{1,0:T(1,128)}', space=vmem, size = 0x12000, scoped, tag = 'internal scratch']
  %s0 = inlined_call_operand.hbm [shape: s32[1,16], index: 0, kind: input, shape index: {}]
  %s1 = inlined_call_operand.hbm [shape: f32[8,16], index: 1, kind: input, shape index: {}]
  %s2 = inlined_call_operand.hbm [shape: f32[1,128], index: 2, kind: output, shape index: {}]
  %s3 = sld [smem:[#allocation0]]
  $region26: #{tpu_custom_call.1} parent=0
    _
  %s5 = ssub.s32 1, %s3
  %s6 = scalar_select 0, %s5, %s3
  $region1: #{tpu_custom_call.1} parent=0
    #allocation2 [shape = 'u8[512]{0}', space=vmem, size = 0x400, scoped, tag = 'input window, operand 0, single buffered']
    #allocation3 [shape = 's32[1]{0}', space=sflag, size = 0x4, scoped, tag = 'scoped memory for tpu_custom_call.1']
    #allocation4 [shape = 's32[1]{0}', space=sflag, size = 0x4, scoped, tag = 'scoped memory for tpu_custom_call.1']
    #allocation5 [shape = 'u8[4096]{0}', space=vmem, size = 0x1000, scoped, tag = 'input window, operand 1, single buffered']
    #allocation6 [shape = 's32[1]{0}', space=sflag, size = 0x4, scoped, tag = 'scoped memory for tpu_custom_call.1']
    #allocation7 [shape = 'u8[512]{0}', space=vmem, size = 0x400, scoped, tag = 'output window, operand 0, single buffered']
    %7 = vsyncpa [#allocation3], 0
    %8 = vsyncpa [#allocation6], 0
    %9 = vsyncpa [#allocation4], 0
    // Predicated region
    $region2: #{tpu_custom_call.1} parent=1 // pred_check
      _
    $region3: #{tpu_custom_call.1} parent=1 // pred_check_branch
      %11 = sbr.rel (0) target = $region5
    $region4: #{tpu_custom_call.1} parent=1 // pred_region
      %s13 = ssub.s32 16, 16
      %14 = vsyncadd [#allocation3], %s13
      %s16 = sshll.u32 [#allocation2], 4
      %s17 = int_to_ptr.vmem [resolvable:$true] %s16
      %19 = dma.hbm_to_vmem [thread:$0]  %s0, 16, %s17, [#allocation3]
    $region5: #{tpu_custom_call.1} parent=1 // pred_fallthru
      _
    // Predicated region
    $region6: #{tpu_custom_call.1} parent=1 // pred_check
      _
    $region7: #{tpu_custom_call.1} parent=1 // pred_check_branch
      %21 = sbr.rel (0) target = $region9
    $region8: #{tpu_custom_call.1} parent=1 // pred_region
      %s23 = ssub.s32 128, 128
      %24 = vsyncadd [#allocation6], %s23
      %s26 = sshll.u32 [#allocation5], 4
      %s27 = int_to_ptr.vmem [resolvable:$true] %s26
      %29 = dma.hbm_to_vmem [thread:$0]  %s1, 128, %s27, [#allocation6]
    $region9: #{tpu_custom_call.1} parent=1 // pred_fallthru
      _
    // Predicated region
    $region10: #{tpu_custom_call.1} parent=1 // pred_check
      _
    $region11: #{tpu_custom_call.1} parent=1 // pred_check_branch
      %31 = sbr.rel (0) target = $region13
    $region12: #{tpu_custom_call.1} parent=1 // pred_region
      %32 = dma.done [#allocation3], 16
    $region13: #{tpu_custom_call.1} parent=1 // pred_fallthru
      _
    // Predicated region
    $region14: #{tpu_custom_call.1} parent=1 // pred_check
      _
    $region15: #{tpu_custom_call.1} parent=1 // pred_check_branch
      %34 = sbr.rel (0) target = $region17
    $region16: #{tpu_custom_call.1} parent=1 // pred_region
      %35 = dma.done [#allocation6], 128
    $region17: #{tpu_custom_call.1} parent=1 // pred_fallthru
      _
    %v36 = vld [vmem:[#allocation2] sm:$0x1]
    %v37 = vld [vmem:[#allocation5] sm:$0xff]
    %v38 = vlaneseq
    %v39 = vshrl.u32 %v38, 7
    %v40 = vlaneseq
    %v41 = vshrl.u32 %v40, 7
    %v42 = vsub.s32 0, %v41
    %v43 = vrot.slane %v36, %v42
    %vm44 = vcmp.eq.s32.totalorder %v39, %v43
    %v45 = vsel %vm44, %v37, 0.0
    %vm46 = vcmask 130048
    %v47 = vsel %vm46, %v45, 0.0
    %v48 = vrot.slane %v47, 4
    %v49 = vadd.f32 %v47, %v48
    %v50 = vrot.slane %v49, 2
    %v51 = vadd.f32 %v49, %v50
    %v52 = vrot.slane %v51, 1
    %v53 = vadd.f32 %v51, %v52
    %v54 = vsub.f32 1.0, %v37
    %v55 = vlog2.pop %v54
    %v56 = vmul.f32 %v55, 0.6931472
    %v57 = vsub.f32 %v53, 0.05
    %v58 = vmax.f32 %v57, 0.0
    %v59 = vadd.f32 %v37, 1.0
    %v60 = vsub.f32 %v59, %v58
    %v61 = vrsqrt.pop %v60
    %v62 = vmul.f32 %v60, %v61
    %vm63 = vcmp.eq.f32.partialorder %v60, inf
    %v64 = vsel %vm63, %v60, %v62
    %vm65 = vcmp.eq.f32.partialorder %v60, 0.0
    %v66 = vand.u32 %v60, 2147483648
    %v67 = vsel %vm65, %v66, %v64
    %v68 = vsub.f32 0.0, %v67
    %v69 = vmul.f32 %v68, %v56
    %v70 = vsel %vm44, 0.0, %v69
    %v71 = vsel %vm46, %v70, 0.0
    %v72 = vrot.slane %v71, 4
    %v73 = vadd.f32 %v71, %v72
    %v74 = vrot.slane %v73, 2
    %v75 = vadd.f32 %v73, %v74
    %v76 = vrot.slane %v75, 1
    %v77 = vadd.f32 %v75, %v76
    %v78 = vlog2.pop %v53
    %v79 = vmul.f32 %v78, 0.6931472
    %v80 = vsub.f32 0.0, %v79
    %v81 = vadd.f32 %v77, %v80
    %v82 = vlaneseq
    %v83 = vand.u32 %v82, 127
    %s84 = smul.u32 0, 16
    %v85 = vstv %s84
    %v86 = vadd.s32 %v85, %v83
    %vm87 = vcmp.lt.s32.totalorder %v86, 16
    %v88 = vsel %vm87, %v81, 0.0
    %v89 = vsel %vm46, %v88, 0.0
    %90 = vadd.xlane.f32.xlu0 %v89
    %v91 = vpop.xlane.xlu0 %90
    %vm92 = vcmp.eq.s32.totalorder %v83, 0
    %v93 = vsel %vm92, %v91, 0.0
    %94 = vst [vmem:[#allocation7] sm:$0x1] %v93
    // Predicated region
    $region18: #{tpu_custom_call.1} parent=1 // pred_check
      _
    $region19: #{tpu_custom_call.1} parent=1 // pred_check_branch
      %96 = sbr.rel (0) target = $region21
    $region20: #{tpu_custom_call.1} parent=1 // pred_region
      %s98 = ssub.s32 16, 16
      %99 = vsyncadd [#allocation4], %s98
      %s101 = sshll.u32 [#allocation7], 4
      %s102 = int_to_ptr.vmem [resolvable:$true] %s101
      %104 = dma.vmem_to_hbm [thread:$0]  %s102, 16, %s2, [#allocation4]
    $region21: #{tpu_custom_call.1} parent=1 // pred_fallthru
      _
    // Predicated region
    $region22: #{tpu_custom_call.1} parent=1 // pred_check
      _
    $region23: #{tpu_custom_call.1} parent=1 // pred_check_branch
      %106 = sbr.rel (0) target = $region25
    $region24: #{tpu_custom_call.1} parent=1 // pred_region
      %107 = dma.done [#allocation4], 16
    $region25: #{tpu_custom_call.1} parent=1 // pred_fallthru
      _
    %108 = vsyncpa [#allocation3], 1
    %109 = vsyncpa [#allocation6], 1
    %110 = vsyncpa [#allocation4], 1

</llo_original>
